<compile_context>
chip_gen: v7x
topology: tpu7x:2x2x1
jax: 0.10.0
libtpu: 0.0.40
codegen_flags: <defaults>
</compile_context>

<pallas_src>
import jax
import jax.numpy as jnp
from jax.experimental import pallas as pl
from jax.experimental.pallas import tpu as pltpu

MEM_CLIP = 3.0    # memory_cell_clip_value (ELMo default cell_clip)
PROJ_CLIP = 3.0   # state_projection_clip_value (ELMo default proj_clip)


def _vmem_limit(bytes_needed):
    # explicit scoped-VMEM limit: 2x need + slack, floored at 16 MiB, capped
    # well below v7x's 64 MiB physical.
    return int(min(max(2 * bytes_needed + (2 << 20), 16 << 20), 48 << 20))


# ----------------------------------------------------------------------------
# Wrapper-side weight packing helpers (fwd/bwd fusion).
# ----------------------------------------------------------------------------
def _blockdiag(wf, wb):
    """(K,N),(K,N) -> (2K,2N) block-diagonal [[wf,0],[0,wb]]."""
    top = jnp.concatenate([wf, jnp.zeros_like(wb)], axis=1)
    bot = jnp.concatenate([jnp.zeros_like(wf), wb], axis=1)
    return jnp.concatenate([top, bot], axis=0)


def _blockdiag_gatemajor(wf, wb, cell):
    """(K,4C),(K,4C) -> (2K,8C) block-diag with gate-major column order
    [i_f,i_b,f_f,f_b,g_f,g_b,o_f,o_b] so packed gate slices are 2C-wide and
    128-lane aligned in the kernel."""
    k = wf.shape[0]
    wf4 = wf.reshape(k, 4, cell)
    wb4 = wb.reshape(k, 4, cell)
    top = jnp.stack([wf4, jnp.zeros_like(wf4)], axis=2).reshape(k, 8 * cell)
    bot = jnp.stack([jnp.zeros_like(wb4), wb4], axis=2).reshape(k, 8 * cell)
    return jnp.concatenate([top, bot], axis=0)


def _bias_gatemajor(bf, bb, cell):
    """(4C,),(4C,) -> (8C,) in gate-major packed order."""
    return jnp.stack([bf.reshape(4, cell), bb.reshape(4, cell)],
                     axis=1).reshape(8 * cell)


# ----------------------------------------------------------------------------
# Pallas kernel: the full stacked bi-directional lattice LSTM, fwd/bwd fused.
#
# Packed layouts (lanes):
#   seq/hbuf : [fwd H | bwd H]   cbuf : [fwd C | bwd C]
#   zin/z    : gate-major [i_f,i_b,f_f,f_b,g_f,g_b,o_f,o_b] (each C wide)
# The bwd half of seq/hbuf/zin is stored in ITERATION order (time-reversed),
# so iteration t consumes row t for both directions with no in-kernel shuffle.
# ----------------------------------------------------------------------------
def _lattice_stack_kernel(x0_ref, pwh_ref, pwc_ref, wi_ref, ws_ref, bs_ref,
                          wp_ref, out_ref, seq, hbuf, cbuf, zin):
    li = pl.program_id(0)
    T, B, H2 = seq.shape          # H2 = 2*hidden
    C2 = cbuf.shape[-1]           # C2 = 2*cell
    G = zin.shape[-1]             # G  = 8*cell

    @pl.when(li == 0)
    def _():
        seq[...] = x0_ref[...]    # layer-0 packed input [x(t) | x(T-1-t)]

    wi = wi_ref[0]                # (2H, 8C) bf16, block-diag gate-major
    ws = ws_ref[0]                # (2H, 8C) bf16
    bs = bs_ref[0]                # (1, 8C)  f32
    wp = wp_ref[0]                # (2C, 2H) bf16, block-diag

    # Hoisted fused input linearity: ONE (T*B, 2H) @ (2H, 8C) MXU op per layer.
    # TODO(synk): at ELMo scale (v7x, 64 MiB VMEM) drop the zin scratch and
    # recompute the input linearity in chunks inside the time loop instead.
    x = seq[...].astype(jnp.bfloat16)
    zin[...] = (jnp.dot(x.reshape(T * B, H2), wi,
                        preferred_element_type=jnp.float32)
                .reshape(T, B, G) + bs)

    # Full unroll (Python loop) so the lattice pooling is statically truncated
    # to slots < t (upper-triangular lattice-weight contract).
    # TODO(synk): at large T switch to partial unroll / a grid axis over time.
    for t in range(T):
        if t == 0:
            # zero initial state: pooled state is zero, state matmul skipped.
            z = zin[0]
            prev_c = jnp.zeros((B, C2), jnp.float32)
        else:
            # lattice 'weighted-sum' pooling over previously written slots,
            # lane-packed across directions (f32 VPU math, v5e-safe).
            wh = pwh_ref[t, :t, :, :]                       # (t, B, 2H)
            wc = pwc_ref[t, :t, :, :]                       # (t, B, 2C)
            prev_h = jnp.sum(wh * hbuf[:t, :, :], axis=0)   # (B, 2H)
            prev_c = jnp.sum(wc * cbuf[:t, :, :], axis=0)   # (B, 2C)
            z = zin[t] + jnp.dot(prev_h.astype(jnp.bfloat16), ws,
                                 preferred_element_type=jnp.float32)
        # gates: each packed slice is 2C wide and 128-lane aligned
        i_g = jax.nn.sigmoid(z[:, 0 * C2:1 * C2])
        f_g = jax.nn.sigmoid(z[:, 1 * C2:2 * C2])
        g_i = jnp.tanh(z[:, 2 * C2:3 * C2])
        o_g = jax.nn.sigmoid(z[:, 3 * C2:4 * C2])
        mem = jnp.clip(i_g * g_i + f_g * prev_c, -MEM_CLIP, MEM_CLIP)
        pre = o_g * jnp.tanh(mem)                            # (B, 2C) packed
        hproj = jnp.clip(jnp.dot(pre.astype(jnp.bfloat16), wp,
                                 preferred_element_type=jnp.float32),
                         -PROJ_CLIP, PROJ_CLIP)              # (B, 2H) packed
        hbuf[t] = hproj
        cbuf[t] = mem

    # Residual skip connections from layer 1 on; seq carries the next layer's
    # packed input. hbuf is already in the carry layout (fwd time-major, bwd
    # iteration-major), so this is a pure full-buffer add / copy.
    @pl.when(li == 0)
    def _():
        seq[...] = hbuf[...]

    @pl.when(li > 0)
    def _():
        seq[...] = seq[...] + hbuf[...]

    # One lane-dense bulk store per layer (no per-batch strided stores).
    out_ref[0] = seq[...]


def lattice_lstm_stack(type_repr_bth, prev_w, rev_prev_w, params):
    """type_repr_bth: (B, T, H) batch-major token representations.
    prev_w / rev_prev_w: (T, B, T) dense 'weighted-sum' lattice weights; row t
    gives per-batch marginals over previously stored state slots in ITERATION
    order (entries for slots >= t must be zero).
    Returns (L, T, B, 2H) packed layer outputs: lanes [:H] = forward output at
    time t, lanes [H:] = backward output at time T-1-t (iteration order)."""
    B, T, H = type_repr_bth.shape
    L = params['num_layers']
    C = params['fwd'][0]['w_proj'].shape[0]
    H2, C2, G = 2 * H, 2 * C, 8 * C

    x0 = jnp.transpose(type_repr_bth, (1, 0, 2))           # (T, B, H)
    # packed layer-0 input: fwd stream time-major, bwd stream time-reversed
    x0dup = jnp.concatenate([x0, x0[::-1]], axis=-1)        # (T, B, 2H)

    # lattice weights -> (T_iter, T_slot, B), lane-broadcast to packed layout.
    # TODO(synk): at scale pass (T,T,B,2) and broadcast in-kernel (or use an
    # MXU formulation) instead of materializing lane-broadcast weights in HBM.
    pwf = jnp.transpose(prev_w, (0, 2, 1))                  # (T, T, B)
    pwb = jnp.transpose(rev_prev_w, (0, 2, 1))
    pw_h = jnp.concatenate([jnp.broadcast_to(pwf[..., None], (T, T, B, H)),
                            jnp.broadcast_to(pwb[..., None], (T, T, B, H))],
                           axis=-1)                         # (T, T, B, 2H)
    pw_c = jnp.concatenate([jnp.broadcast_to(pwf[..., None], (T, T, B, C)),
                            jnp.broadcast_to(pwb[..., None], (T, T, B, C))],
                           axis=-1)                         # (T, T, B, 2C)

    # block-diagonal fused weights (bf16 MXU operands, f32 bias).
    w_in_bd = jnp.stack([_blockdiag_gatemajor(params['fwd'][l]['w_in'],
                                              params['bwd'][l]['w_in'], C)
                         for l in range(L)]).astype(jnp.bfloat16)    # (L,2H,8C)
    w_state_bd = jnp.stack([_blockdiag_gatemajor(params['fwd'][l]['w_state'],
                                                 params['bwd'][l]['w_state'], C)
                            for l in range(L)]).astype(jnp.bfloat16)  # (L,2H,8C)
    b_state_pk = jnp.stack([_bias_gatemajor(params['fwd'][l]['b_state'],
                                            params['bwd'][l]['b_state'], C)
                            for l in range(L)]).reshape(L, 1, G)      # (L,1,8C)
    w_proj_bd = jnp.stack([_blockdiag(params['fwd'][l]['w_proj'],
                                      params['bwd'][l]['w_proj'])
                           for l in range(L)]).astype(jnp.bfloat16)   # (L,2C,2H)

    scratch_bytes = (T * B * H2 + T * B * H2 + T * B * C2 + T * B * G) * 4
    block_bytes = ((T * B * H2) * 4 + (T * T * B * H2) * 4 + (T * T * B * C2) * 4
                   + (H2 * G) * 2 + (H2 * G) * 2 + G * 4 + (C2 * H2) * 2
                   + (T * B * H2) * 4)

    grid_spec = pltpu.PrefetchScalarGridSpec(
        num_scalar_prefetch=0,
        grid=(L,),
        in_specs=[
            pl.BlockSpec((T, B, H2), lambda li: (0, 0, 0)),          # x0dup
            pl.BlockSpec((T, T, B, H2), lambda li: (0, 0, 0, 0)),    # pw_h
            pl.BlockSpec((T, T, B, C2), lambda li: (0, 0, 0, 0)),    # pw_c
            pl.BlockSpec((1, H2, G), lambda li: (li, 0, 0)),         # w_in_bd
            pl.BlockSpec((1, H2, G), lambda li: (li, 0, 0)),         # w_state_bd
            pl.BlockSpec((1, 1, G), lambda li: (li, 0, 0)),          # b_state_pk
            pl.BlockSpec((1, C2, H2), lambda li: (li, 0, 0)),        # w_proj_bd
        ],
        out_specs=pl.BlockSpec((1, T, B, H2), lambda li: (li, 0, 0, 0)),
        scratch_shapes=[
            pltpu.VMEM((T, B, H2), jnp.float32),     # seq (layer input carry)
            pltpu.VMEM((T, B, H2), jnp.float32),     # hbuf (stored hiddens)
            pltpu.VMEM((T, B, C2), jnp.float32),     # cbuf (stored memories)
            pltpu.VMEM((T, B, G), jnp.float32),      # zin (hoisted input lin.)
        ],
    )
    # TODO(synk): on v7x (2 TensorCores) the fwd/bwd streams could instead be
    # sharded across cores via a parallel direction grid axis / pl.core_map.
    return pl.pallas_call(
        _lattice_stack_kernel,
        out_shape=jax.ShapeDtypeStruct((L, T, B, H2), jnp.float32),
        grid_spec=grid_spec,
        compiler_params=pltpu.CompilerParams(
            dimension_semantics=("arbitrary",),
            vmem_limit_bytes=_vmem_limit(scratch_bytes + 2 * block_bytes)),
    )(x0dup, pw_h, pw_c, w_in_bd, w_state_bd, b_state_pk, w_proj_bd)


# ----------------------------------------------------------------------------
# Pallas kernel: tiled dense linear layer (char-CNN projection and decoder).
# ----------------------------------------------------------------------------
def _linear_kernel(x_ref, w_ref, b_ref, o_ref):
    o_ref[...] = (jnp.dot(x_ref[...].astype(jnp.bfloat16), w_ref[...],
                          preferred_element_type=jnp.float32) + b_ref[...])


def _pick_tile(dim, candidates):
    for c in candidates:
        if dim % c == 0:
            return c
    return dim


def pallas_linear(x2d, w, b):
    N, K = x2d.shape
    V = w.shape[1]
    w_bf = w.astype(jnp.bfloat16)
    b2 = b.reshape(1, V).astype(jnp.float32)
    tn = _pick_tile(N, (256, 128, 64, 32, 16, 8))
    tv = _pick_tile(V, (512, 256, 128))
    block_bytes = tn * K * 4 + K * tv * 2 + tv * 4 + tn * tv * 4
    return pl.pallas_call(
        _linear_kernel,
        out_shape=jax.ShapeDtypeStruct((N, V), jnp.float32),
        grid_spec=pltpu.PrefetchScalarGridSpec(
            num_scalar_prefetch=0,
            grid=(N // tn, V // tv),
            in_specs=[pl.BlockSpec((tn, K), lambda i, j: (i, 0)),
                      pl.BlockSpec((K, tv), lambda i, j: (0, j)),
                      pl.BlockSpec((1, tv), lambda i, j: (0, j))],
            out_specs=pl.BlockSpec((tn, tv), lambda i, j: (i, j)),
        ),
        compiler_params=pltpu.CompilerParams(
            dimension_semantics=("parallel", "parallel"),
            vmem_limit_bytes=_vmem_limit(2 * block_bytes)),
    )(x2d, w_bf, b2)


# ----------------------------------------------------------------------------
# Simplified ELMo character encoder (token embedder).
# ----------------------------------------------------------------------------
def char_encoder(char_ids, params):
    # TODO(synk): AllenNLP's _ElmoCharacterEncoder re-adds BOS/EOS and runs a
    # multi-width char CNN + highway network configured by the options file;
    # here we use a width-1 char CNN + max-pool + Pallas linear projection.
    emb = params['char_emb'][char_ids]                            # (B,T,Cmax,E)
    feats = jax.nn.relu(jnp.einsum('btce,ef->btcf', emb, params['char_w']))
    feats = feats.max(axis=2)                                     # (B,T,F)
    B, T, F = feats.shape
    proj = pallas_linear(feats.reshape(B * T, F),
                         params['char_proj_w'], params['char_proj_b'])
    return proj.reshape(B, T, -1)                                 # (B,T,H)


# ----------------------------------------------------------------------------
# Full LatticeELMoLM forward.
# ----------------------------------------------------------------------------
def lattice_elmo_lm_forward(params, char_inputs, prev_w, rev_prev_w):
    """char_inputs: (B, S, Cmax) int32 character ids (0 = padding).
    prev_w / rev_prev_w: (T, B, T) dense lattice predecessor weights
    (row t gives 'weighted-sum' marginals over stored state slots < t,
    iteration-slot order for both directions)."""
    B, S, _ = char_inputs.shape

    # mask / length computation and boundary handling (as in _LatticeElmoBiLm)
    mask_full = ((char_inputs > 0).sum(-1) > 0).astype(jnp.int32)   # (B, S)
    lengths = mask_full.sum(1)                                      # (B,)
    token_idx = jnp.arange(S)[None, :]
    keep = (token_idx != (lengths[:, None] - 1))                    # zero EOS
    char_inputs = char_inputs * keep[:, :, None].astype(char_inputs.dtype)
    char_inputs = char_inputs[:, 1:-1]                              # strip BOS/EOS

    type_repr = char_encoder(char_inputs, params)                   # (B,T,H)
    mask = ((char_inputs > 0).sum(-1) > 0).astype(jnp.float32)      # (B,T)
    _, T, H = type_repr.shape
    L = params['num_layers']
    V = params['dec_w'].shape[1]

    # TODO(synk): sort_and_run_forward / pack_padded_sequence (variable-length
    # batching + restoration indices) omitted: equal-length sequences assumed
    # (layer activations are therefore not re-masked at padded positions).
    out_tb = lattice_lstm_stack(type_repr, prev_w, rev_prev_w, params)
    # un-pack: fwd lanes are time-major, bwd lanes are time-reversed
    layer_fwd = out_tb[..., :H]                                     # (L,T,B,H)
    layer_bwd = out_tb[:, ::-1, :, H:]                              # (L,T,B,H)
    layer_out = jnp.transpose(
        jnp.concatenate([layer_fwd, layer_bwd], axis=-1), (0, 2, 1, 3))

    activations = [jnp.concatenate([type_repr, type_repr], axis=-1)
                   * mask[:, :, None]]
    for li in range(L):
        activations.append(layer_out[li])                           # (B,T,2H)

    # fused shared decoder: the duplicated block-diagonal weight decodes the
    # fwd and bwd halves of the packed last-layer output in ONE matmul
    # (no wrapper-side split + concat HBM round trip).
    # TODO(synk): at large vocab, tile V and reuse a single (H,V) weight tile
    # for both halves instead of duplicating the decoder weight.
    dec_w_bd = _blockdiag(params['dec_w'], params['dec_w'])          # (2H, 2V)
    dec_b_bd = jnp.concatenate([params['dec_b'], params['dec_b']])   # (2V,)
    x_dec = out_tb[L - 1].reshape(T * B, 2 * H)                      # packed
    logits_pk = pallas_linear(x_dec, dec_w_bd, dec_b_bd)             # (T*B, 2V)
    logits_f = jnp.transpose(logits_pk[:, :V].reshape(T, B, V), (1, 0, 2))
    logits_b = jnp.transpose(logits_pk[:, V:].reshape(T, B, V)[::-1], (1, 0, 2))
    return logits_f, logits_b, activations


# ----------------------------------------------------------------------------
# Deterministic parameter initialization.
# ----------------------------------------------------------------------------
def init_params(key, *, hidden=32, cell=64, num_layers=2, vocab=128,
                char_vocab=262, char_emb_dim=16, char_feat=64):
    def nrm(k, shape, scale=0.1):
        return scale * jax.random.normal(k, shape, dtype=jnp.float32)

    keys = iter(jax.random.split(key, 8 * num_layers + 8))
    params = {
        'num_layers': num_layers,
        'char_emb': nrm(next(keys), (char_vocab, char_emb_dim)),
        'char_w': nrm(next(keys), (char_emb_dim, char_feat)),
        'char_proj_w': nrm(next(keys), (char_feat, hidden)),
        'char_proj_b': nrm(next(keys), (hidden,)),
        'dec_w': nrm(next(keys), (hidden, vocab)),
        'dec_b': nrm(next(keys), (vocab,)),
        'fwd': [], 'bwd': [],
    }
    for _ in range(num_layers):
        for side in ('fwd', 'bwd'):
            params[side].append({
                'w_in':    nrm(next(keys), (hidden, 4 * cell)),
                'w_state': nrm(next(keys), (hidden, 4 * cell)),
                'b_state': nrm(next(keys), (4 * cell,)),
                'w_proj':  nrm(next(keys), (cell, hidden)),
            })
    return params


def make_chain_lattice(T, B):
    """Dense 'weighted-sum' predecessor weights: mostly a chain, with a
    two-predecessor weighted merge for t >= 2 to exercise the lattice path.
    Entries for slots >= t are zero (slot t is written at iteration t)."""
    w = jnp.zeros((T, B, T), dtype=jnp.float32)
    for t in range(1, T):
        if t >= 2:
            w = w.at[t, :, t - 1].set(0.7)
            w = w.at[t, :, t - 2].set(0.3)
        else:
            w = w.at[t, :, t - 1].set(1.0)
    return w


if __name__ == "__main__":
    key = jax.random.PRNGKey(0)
    k_param, k_in = jax.random.split(key)

    B, S, CMAX = 2, 10, 8          # batch, seq (incl. BOS/EOS), chars per token
    T = S - 2                      # tokens after boundary stripping
    params = init_params(k_param, hidden=32, cell=64, num_layers=2, vocab=128)

    # character ids in [1, 262) -> every token is valid (full-length sequences)
    char_inputs = jax.random.randint(k_in, (B, S, CMAX), 1, 262, dtype=jnp.int32)
    prev_w = make_chain_lattice(T, B)       # forward-direction lattice
    rev_prev_w = make_chain_lattice(T, B)   # backward-direction lattice (iter-order)

    logits_f, logits_b, activations = lattice_elmo_lm_forward(
        params, char_inputs, prev_w, rev_prev_w)

    jax.block_until_ready((logits_f, logits_b, activations))
    assert logits_f.shape == (B, T, 128) and logits_b.shape == (B, T, 128)
    assert len(activations) == params['num_layers'] + 1
    assert all(a.shape == (B, T, 64) for a in activations)
    print("KERNEL_OK")
</pallas_src>

<mosaic_0001>
module attributes {stable_mosaic.version = 11 : i64} {
  func.func @_linear_kernel(%arg0: i32, %arg1: i32, %arg2: memref<16x64xf32, #tpu.memory_space<vmem>>, %arg3: memref<64x32xbf16, #tpu.memory_space<vmem>>, %arg4: memref<1x32xf32, #tpu.memory_space<vmem>>, %arg5: memref<16x32xf32, #tpu.memory_space<vmem>>) attributes {dimension_semantics = [#tpu.dimension_semantics<parallel>, #tpu.dimension_semantics<parallel>], iteration_bounds = array<i64: 1, 1>, scalar_prefetch = 0 : i64, scratch_operands = 0 : i64, tpu.core_type = #tpu.core_type<tc>, window_params = [{transform_indices = @transform_0, window_bounds = array<i64: 16, 64>}, {transform_indices = @transform_1, window_bounds = array<i64: 64, 32>}, {transform_indices = @transform_2, window_bounds = array<i64: 1, 32>}, {transform_indices = @transform_3, window_bounds = array<i64: 16, 32>}]} {
    %c0 = arith.constant 0 : index
    %c0_0 = arith.constant 0 : index
    %0 = vector.load %arg2[%c0, %c0_0] : memref<16x64xf32, #tpu.memory_space<vmem>>, vector<16x64xf32>
    %1 = arith.truncf %0 : vector<16x64xf32> to vector<16x64xbf16>
    %c0_1 = arith.constant 0 : index
    %c0_2 = arith.constant 0 : index
    %2 = vector.load %arg3[%c0_1, %c0_2] : memref<64x32xbf16, #tpu.memory_space<vmem>>, vector<64x32xbf16>
    %cst = arith.constant dense<0.000000e+00> : vector<16x32xf32>
    %3 = tpu.matmul %1, %2, %cst {dimension_numbers = #tpu.dot_dimension_numbers<[1], [0], [0], [1], [0, 0, 1, 1], [], []>} : vector<16x64xbf16>, vector<64x32xbf16>, vector<16x32xf32> -> vector<16x32xf32>
    %c0_3 = arith.constant 0 : index
    %c0_4 = arith.constant 0 : index
    %4 = vector.load %arg4[%c0_3, %c0_4] : memref<1x32xf32, #tpu.memory_space<vmem>>, vector<1x32xf32>
    %5 = vector.broadcast %4 : vector<1x32xf32> to vector<16x32xf32>
    %6 = arith.addf %3, %5 : vector<16x32xf32>
    %c0_5 = arith.constant 0 : index
    %c0_6 = arith.constant 0 : index
    %7 = vector.load %arg5[%c0_5, %c0_6] : memref<16x32xf32, #tpu.memory_space<vmem>>, vector<16x32xf32>
    tpu.vector_store %arg5[%c0_5, %c0_6], %6 {strides = array<i32>} : memref<16x32xf32, #tpu.memory_space<vmem>>, vector<16x32xf32>,
    return
  }
  func.func @transform_0(%arg0: i32, %arg1: i32) -> (i32, i32) {
    %c0_i32 = arith.constant 0 : i32
    %c0_i32_0 = arith.constant 0 : i32
    return %arg0, %c0_i32 : i32, i32
  }
  func.func @transform_1(%arg0: i32, %arg1: i32) -> (i32, i32) {
    %c0_i32 = arith.constant 0 : i32
    %c0_i32_0 = arith.constant 0 : i32
    return %c0_i32, %arg1 : i32, i32
  }
  func.func @transform_2(%arg0: i32, %arg1: i32) -> (i32, i32) {
    %c0_i32 = arith.constant 0 : i32
    %c0_i32_0 = arith.constant 0 : i32
    return %c0_i32, %arg1 : i32, i32
  }
  func.func @transform_3(%arg0: i32, %arg1: i32) -> (i32, i32) {
    %c0_i32 = arith.constant 0 : i32
    return %arg0, %arg1 : i32, i32
  }
}

</mosaic_0001>

<llo_original>
// kernel: tpu_custom_call.1
$region0: #{tpu_custom_call.1}
  #allocation0 [shape = 'u32[]', space=smem, size = 0x4, offset = 0x4, fixed_abs, tag = 'smem constant byte address 0x4 - core index']
  #allocation1 [shape = 'u32[144,128]{1,0:T(1,128)}', space=vmem, size = 0x12000, scoped, tag = 'internal scratch']
  %s0 = inlined_call_operand.vmem [shape: f32[16,64], index: 0, kind: input, shape index: {}]
  %s1 = inlined_call_operand.vmem [shape: bf16[64,32], index: 1, kind: input, shape index: {}]
  %s2 = inlined_call_operand.vmem [shape: f32[1,32], index: 2, kind: input, shape index: {}]
  %s3 = inlined_call_operand.hbm [shape: f32[16,32], index: 3, kind: output, shape index: {}]
  %s4 = sld [smem:[#allocation0]]
  $region22: #{tpu_custom_call.1} parent=0
    _
  %s6 = ssub.s32 1, %s4
  %s7 = scalar_select 0, %s6, %s4
  $region1: #{tpu_custom_call.1} parent=0
    #allocation2 [shape = 'u8[8192]{0}', space=vmem, size = 0x2000, scoped, tag = 'output window, operand 0, single buffered']
    #allocation3 [shape = 's32[1]{0}', space=sflag, size = 0x4, scoped, tag = 'scoped memory for tpu_custom_call.1']
    %8 = vsyncpa [#allocation3], 0
    // Predicated region
    $region2: #{tpu_custom_call.1} parent=1 // pred_check
      _
    $region3: #{tpu_custom_call.1} parent=1 // pred_check_branch
      %10 = sbr.rel (0) target = $region5
    $region4: #{tpu_custom_call.1} parent=1 // pred_region
      _
    $region5: #{tpu_custom_call.1} parent=1 // pred_fallthru
      _
    // Predicated region
    $region6: #{tpu_custom_call.1} parent=1 // pred_check
      _
    $region7: #{tpu_custom_call.1} parent=1 // pred_check_branch
      %12 = sbr.rel (0) target = $region9
    $region8: #{tpu_custom_call.1} parent=1 // pred_region
      _
    $region9: #{tpu_custom_call.1} parent=1 // pred_fallthru
      _
    // Predicated region
    $region10: #{tpu_custom_call.1} parent=1 // pred_check
      _
    $region11: #{tpu_custom_call.1} parent=1 // pred_check_branch
      %14 = sbr.rel (0) target = $region13
    $region12: #{tpu_custom_call.1} parent=1 // pred_region
      _
    $region13: #{tpu_custom_call.1} parent=1 // pred_fallthru
      _
    %v16 = vld [vmem:[%s0] sm:$0xff]
    %v17 = vld [vmem:[%s0 + $0x8] sm:$0xff]
    %v18 = vpack.c.bf16 %v17, %v16
    %v19 = vld [vmem:[%s1] sm:$0xf]
    %v20 = vld [vmem:[%s1 + $0x4] sm:$0xf]
    %v21 = vld [vmem:[%s1 + $0x8] sm:$0xf]
    %v22 = vld [vmem:[%s1 + $0xc] sm:$0xf]
    %v23 = vld [vmem:[%s1 + $0x10] sm:$0xf]
    %v24 = vld [vmem:[%s1 + $0x14] sm:$0xf]
    %v25 = vld [vmem:[%s1 + $0x18] sm:$0xf]
    %v26 = vld [vmem:[%s1 + $0x1c] sm:$0xf]
    %v27 = vld [vmem:[%s2] sm:$0x1]
    %v29 = vlaneseq
    %v30 = vshrl.u32 %v29, 7
    %v31 = vsub.s32 0, %v30
    %v32 = vrot.slane %v27, %v31
    %v42 = vunpack.c.l.b16 %v19
    %v43 = vunpack.c.l.b16 %v20
    %v44 = vunpack.c.l.b16 %v21
    %v45 = vunpack.c.l.b16 %v22
    %v46 = vunpack.c.l.b16 %v23
    %v47 = vunpack.c.l.b16 %v24
    %v48 = vunpack.c.l.b16 %v25
    %v49 = vunpack.c.l.b16 %v26
    %v50 = vpack.c.b16 %v43, %v42
    %v51 = vpack.c.b16 %v45, %v44
    %v52 = vpack.c.b16 %v47, %v46
    %v53 = vpack.c.b16 %v49, %v48
    %vm58 = vcmask 523264
    %v60 = vsel %vm58, %v18, 0
    %62 = vmatprep.subr.bf16.mxu0 0
    %63 = vmatpush1.bf16.msra.mxu0 %v50
    %64 = vmatprep.subr.bf16.mxu0 0
    %65 = vmatpush1.bf16.msra.mxu0 %v51
    %66 = vmatprep.subr.bf16.mxu0 0
    %67 = vmatpush1.bf16.msra.mxu0 %v52
    %68 = vmatprep.subr.bf16.mxu0 0
    %69 = vmatpush1.bf16.msra.mxu0 %v53
    %70 = vmatprep.subr.bf16.mxu0 0
    %71 = vmatpush1.bf16.msra.mxu0 0
    %72 = vmatprep.subr.bf16.mxu0 0
    %73 = vmatpush1.bf16.msra.mxu0 0
    %74 = vmatprep.subr.bf16.mxu0 0
    %75 = vmatpush1.bf16.msra.mxu0 0
    %76 = vmatprep.subr.bf16.mxu0 0
    %77 = vmatpush1.bf16.msra.mxu0 0
    %78 = vmatprep.subr.bf16.mxu0 0
    %79 = vmatpush1.bf16.msra.mxu0 0
    %80 = vmatprep.subr.bf16.mxu0 0
    %81 = vmatpush1.bf16.msra.mxu0 0
    %82 = vmatprep.subr.bf16.mxu0 0
    %83 = vmatpush1.bf16.msra.mxu0 0
    %84 = vmatprep.subr.bf16.mxu0 0
    %85 = vmatpush1.bf16.msra.mxu0 0
    %86 = vmatprep.subr.bf16.mxu0 0
    %87 = vmatpush1.bf16.msra.mxu0 0
    %88 = vmatprep.subr.bf16.mxu0 0
    %89 = vmatpush1.bf16.msra.mxu0 0
    %90 = vmatprep.subr.bf16.mxu0 0
    %91 = vmatpush1.bf16.msra.mxu0 0
    %92 = vmatprep.subr.bf16.mxu0 0
    %93 = vmatpush1.bf16.msra.mxu0 0
    %94 = vmatprep.mubr.bf16.mxu0 0
    %95 = vmatmul.mubr.bf16.gmra.mrb[0].mxu0 %v60
    %v96 = vpop.f32.mrb[0].mxu0
    %v97 = vadd.f32 %v32, %v96
    %v98 = vpop.f32.mrb[0].mxu0
    %v99 = vpop.f32.mrb[0].mxu0
    %v100 = vadd.f32 %v32, %v99
    %v101 = vpop.f32.mrb[0].mxu0
    %102 = vdwg.mxu0
    %vm103 = vcmask 261120
    %104 = vst.msk [vmem:[#allocation2] sm:$0xff] %vm103, %v97
    %105 = vst.msk [vmem:[#allocation2 + $0x8] sm:$0xff] %vm103, %v100
    // Predicated region
    $region14: #{tpu_custom_call.1} parent=1 // pred_check
      _
    $region15: #{tpu_custom_call.1} parent=1 // pred_check_branch
      %107 = sbr.rel (0) target = $region17
    $region16: #{tpu_custom_call.1} parent=1 // pred_region
      %s109 = ssub.s32 256, 256
      %110 = vsyncadd [#allocation3], %s109
      %s111 = sshll.u32 [#allocation2], 4
      %s112 = int_to_ptr.vmem [resolvable:$true] %s111
      %117 = dma.vmem_to_hbm [thread:$0]  %s112, 256, %s3, [#allocation3], 128, 128, 8
    $region17: #{tpu_custom_call.1} parent=1 // pred_fallthru
      _
    // Predicated region
    $region18: #{tpu_custom_call.1} parent=1 // pred_check
      _
    $region19: #{tpu_custom_call.1} parent=1 // pred_check_branch
      %119 = sbr.rel (0) target = $region21
    $region20: #{tpu_custom_call.1} parent=1 // pred_region
      %120 = dma.done [#allocation3], 256
    $region21: #{tpu_custom_call.1} parent=1 // pred_fallthru
      _
    %121 = vsyncpa [#allocation3], 1

</llo_original>
